<compile_context>
chip_gen: v7x
topology: tpu7x:2x2x1
jax: 0.10.0
libtpu: 0.0.40
codegen_flags: <defaults>
</compile_context>

<pallas_src>
import math

import jax
import jax.numpy as jnp
from jax import lax
from jax.experimental import pallas as pl
from jax.experimental.pallas import tpu as pltpu

# ---- problem sizes (small, consistent with the module) ---------------------
B = 2        # batch
S = 8        # sequence length
D = 32       # model dim ("size")
H = 4        # attention heads
DK = D // H
DFF = 64     # feed-forward hidden dim
EPS = 1e-6
SCALE = 1.0 / math.sqrt(DK)
NEG = -1e9

N = B * S                      # folded rows (batch folded into the sublane axis)

# f32 slab layout: rows 0..H*N-1 = per-head-tiled attention bias, then one vector/row
ROW_A1 = H * N + 0
ROW_B1 = H * N + 1
ROW_A2 = H * N + 2
ROW_B2 = H * N + 3
ROW_BQKV = H * N + 4           # [bq*SCALE | bk | bv]  (3*D wide, lane 0 aligned)
ROW_BO = H * N + 5
ROW_BF1 = H * N + 6
ROW_BF2 = H * N + 7
FSLAB_ROWS = H * N + 8         # 72

# bf16 weight slab layout: 128-lane-aligned column blocks
COL_WPROJ = 0                  # (D, 4D) = [wq*SCALE | wk | wv | wo]
COL_W1 = 128                   # (D, DFF)
COL_W2T = 256                  # (D, DFF) = w2^T
WSLAB_COLS = 384


def _layer_norm(t, a, b):
    """Annotated-Transformer LayerNorm: unbiased std (N-1 divisor), eps added to std."""
    mean = jnp.mean(t, axis=-1, keepdims=True)
    var = jnp.sum((t - mean) ** 2, axis=-1, keepdims=True) / (t.shape[-1] - 1.0)
    return a * (t - mean) / (jnp.sqrt(var) + EPS) + b


def encoder_layer_kernel(x_ref, f_ref, w_ref, out_ref):
    x = x_ref[...]                         # (B*S, D) f32
    fs = f_ref[...]                        # (FSLAB_ROWS, 128) f32
    ws = w_ref[...]                        # (D, WSLAB_COLS) bf16

    bias4 = fs[0:H * N, 0:N]               # (H*N, N): 0 on valid keys, -1e9 elsewhere
    a1 = fs[ROW_A1:ROW_A1 + 1, 0:D]
    b1 = fs[ROW_B1:ROW_B1 + 1, 0:D]
    a2 = fs[ROW_A2:ROW_A2 + 1, 0:D]
    b2 = fs[ROW_B2:ROW_B2 + 1, 0:D]
    bqkv = fs[ROW_BQKV:ROW_BQKV + 1, 0:3 * D]
    bo = fs[ROW_BO:ROW_BO + 1, 0:D]
    bf1 = fs[ROW_BF1:ROW_BF1 + 1, 0:DFF]
    bf2 = fs[ROW_BF2:ROW_BF2 + 1, 0:D]

    wproj = ws[:, COL_WPROJ:COL_WPROJ + 4 * D]   # [wq*SCALE | wk | wv | wo]
    w1 = ws[:, COL_W1:COL_W1 + DFF]
    w2t = ws[:, COL_W2T:COL_W2T + DFF]           # w2 transposed: (D, DFF)

    # ---- sublayer 0: pre-norm multi-head self-attention + residual ---------
    nx = _layer_norm(x, a1, b1)
    qkv = jnp.dot(nx.astype(jnp.bfloat16), wproj[:, 0:3 * D],
                  preferred_element_type=jnp.float32) + bqkv         # (B*S, 3D)
    q_bf = qkv[:, 0:D].astype(jnp.bfloat16)      # already scaled by 1/sqrt(DK)
    k_bf = qkv[:, D:2 * D].astype(jnp.bfloat16)
    v_bf = qkv[:, 2 * D:3 * D].astype(jnp.bfloat16)

    # Per-head NT score matmuls (no k transpose), stacked along the sublane axis so
    # the mask add / max / exp / sum / reciprocal run ONCE for all heads.
    scores = [
        lax.dot_general(q_bf[:, h * DK:(h + 1) * DK], k_bf[:, h * DK:(h + 1) * DK],
                        (((1,), (1,)), ((), ())),
                        preferred_element_type=jnp.float32)          # (N, N)
        for h in range(H)
    ]
    s_all = jnp.concatenate(scores, axis=0) + bias4                  # (H*N, N)
    s_all = s_all - jnp.max(s_all, axis=-1, keepdims=True)           # kept for safety
    e = jnp.exp(s_all)
    p_all = (e * pl.reciprocal(jnp.sum(e, axis=-1, keepdims=True),
                               approx=True)).astype(jnp.bfloat16)    # (H*N, N)

    heads = [
        jnp.dot(p_all[h * N:(h + 1) * N, :], v_bf[:, h * DK:(h + 1) * DK],
                preferred_element_type=jnp.float32)                  # (N, DK)
        for h in range(H)
    ]
    attn = jnp.concatenate(heads, axis=-1)                           # (N, D)

    o = jnp.dot(attn.astype(jnp.bfloat16), wproj[:, 3 * D:4 * D],
                preferred_element_type=jnp.float32) + bo
    x1 = x + o                             # residual (dropout = identity at inference)

    # ---- sublayer 1: pre-norm position-wise feed-forward + residual --------
    nx2 = _layer_norm(x1, a2, b2)
    hdn = jnp.dot(nx2.astype(jnp.bfloat16), w1,
                  preferred_element_type=jnp.float32) + bf1
    hdn = jnp.maximum(hdn, 0.0)
    ff = lax.dot_general(hdn.astype(jnp.bfloat16), w2t,              # hdn @ w2
                         (((1,), (1,)), ((), ())),
                         preferred_element_type=jnp.float32) + bf2

    out_ref[...] = (x1 + ff).astype(out_ref.dtype)


def pack_inputs(params, mask):
    """One-time host-side packing (hoisted out of the per-call path).

    Returns:
      fslab: (FSLAB_ROWS, 128) f32 — per-head-tiled block-diagonal attention bias
             plus every LN gain/shift and bias vector, one per sublane row, lane 0.
      wslab: (D, WSLAB_COLS) bf16 — [wq*SCALE|wk|wv|wo] | w1 | w2^T at 128-lane offsets.
    """
    (a1, b1, wq, bq, wk, bk, wv, bv, wo, bo, a2, b2, w1, bf1, w2, bf2) = params

    wslab = jnp.zeros((D, WSLAB_COLS), jnp.float32)
    wslab = wslab.at[:, 0:D].set(wq * SCALE)           # SCALE folded into wq
    wslab = wslab.at[:, D:2 * D].set(wk)
    wslab = wslab.at[:, 2 * D:3 * D].set(wv)
    wslab = wslab.at[:, 3 * D:4 * D].set(wo)
    wslab = wslab.at[:, COL_W1:COL_W1 + DFF].set(w1)
    wslab = wslab.at[:, COL_W2T:COL_W2T + DFF].set(w2.T)
    wslab = wslab.astype(jnp.bfloat16)

    # Block-diagonal additive bias over folded (B*S) rows: -1e9 on masked keys AND on
    # every cross-batch key (prevents batch leakage); tiled H times along sublanes so
    # the kernel adds it once to the stacked per-head scores.
    bias = jnp.full((N, N), NEG, jnp.float32)
    for b in range(B):
        blk = jnp.where(mask[b] == 0, jnp.float32(NEG), jnp.float32(0.0))
        bias = bias.at[b * S:(b + 1) * S, b * S:(b + 1) * S].set(blk)
    bias4 = jnp.tile(bias, (H, 1))                     # (H*N, N)

    fslab = jnp.zeros((FSLAB_ROWS, 128), jnp.float32)
    fslab = fslab.at[0:H * N, 0:N].set(bias4)
    fslab = fslab.at[ROW_A1, 0:D].set(a1[0])
    fslab = fslab.at[ROW_B1, 0:D].set(b1[0])
    fslab = fslab.at[ROW_A2, 0:D].set(a2[0])
    fslab = fslab.at[ROW_B2, 0:D].set(b2[0])
    fslab = fslab.at[ROW_BQKV, 0:D].set(bq[0] * SCALE)  # SCALE folded into bq
    fslab = fslab.at[ROW_BQKV, D:2 * D].set(bk[0])
    fslab = fslab.at[ROW_BQKV, 2 * D:3 * D].set(bv[0])
    fslab = fslab.at[ROW_BO, 0:D].set(bo[0])
    fslab = fslab.at[ROW_BF1, 0:DFF].set(bf1[0])
    fslab = fslab.at[ROW_BF2, 0:D].set(bf2[0])
    return fslab, wslab


@jax.jit
def encoder_layer(x, fslab, wslab):
    """x: (B, S, D) f32; fslab/wslab: precomputed packed operands (see pack_inputs)."""
    x2 = x.reshape(B * S, D)
    out = pl.pallas_call(
        encoder_layer_kernel,
        out_shape=jax.ShapeDtypeStruct((B * S, D), jnp.float32),
        grid_spec=pltpu.PrefetchScalarGridSpec(
            num_scalar_prefetch=0,
            grid=(1,),                    # single step: whole working set is ~70 KiB
            in_specs=[
                pl.BlockSpec((B * S, D), lambda i: (0, 0)),            # x slab
                pl.BlockSpec((FSLAB_ROWS, 128), lambda i: (0, 0)),     # bias + vectors
                pl.BlockSpec((D, WSLAB_COLS), lambda i: (0, 0)),       # packed bf16 weights
            ],
            out_specs=pl.BlockSpec((B * S, D), lambda i: (0, 0)),
        ),
        compiler_params=pltpu.CompilerParams(
            dimension_semantics=("arbitrary",),
        ),
    )(x2, fslab, wslab)
    return out.reshape(B, S, D)


# ---- pure-JAX reference ----------------------------------------------------
def encoder_layer_ref(x, mask, params, bf16_operands=True):
    """Reference. bf16_operands=True mirrors the kernel's MXU math (bf16 operands,
    f32 accumulate, SCALE folded into wq/bq); False is all-f32 module math
    (the SCALE folding is mathematically identical in f32)."""
    (a1, b1, wq, bq, wk, bk, wv, bv, wo, bo, a2, b2, w1, bf1, w2, bf2) = params

    def mm(a, w):
        if bf16_operands:
            a, w = a.astype(jnp.bfloat16), w.astype(jnp.bfloat16)
        return jnp.dot(a, w, preferred_element_type=jnp.float32)

    out = []
    for bi in range(B):
        xb, mb = x[bi], mask[bi]
        nx = _layer_norm(xb, a1, b1)
        q = mm(nx, wq * SCALE) + bq * SCALE
        k = mm(nx, wk) + bk
        v = mm(nx, wv) + bv
        heads = []
        for h in range(H):
            sl = slice(h * DK, (h + 1) * DK)
            sc = mm(q[:, sl], k[:, sl].T)
            sc = jnp.where(mb == 0, NEG, sc)
            p = jax.nn.softmax(sc, axis=-1)
            heads.append(mm(p, v[:, sl]))
        attn = jnp.concatenate(heads, axis=-1)
        x1 = xb + (mm(attn, wo) + bo)
        nx2 = _layer_norm(x1, a2, b2)
        ff = mm(jnp.maximum(mm(nx2, w1) + bf1, 0.0), w2) + bf2
        out.append(x1 + ff)
    return jnp.stack(out)


def make_params(key):
    ks = jax.random.split(key, 8)
    scale = 0.1
    a1 = jnp.ones((1, D), jnp.float32)
    b1 = jnp.zeros((1, D), jnp.float32)
    a2 = jnp.ones((1, D), jnp.float32)
    b2 = jnp.zeros((1, D), jnp.float32)
    wq = scale * jax.random.normal(ks[0], (D, D), jnp.float32)
    wk = scale * jax.random.normal(ks[1], (D, D), jnp.float32)
    wv = scale * jax.random.normal(ks[2], (D, D), jnp.float32)
    wo = scale * jax.random.normal(ks[3], (D, D), jnp.float32)
    bq = scale * jax.random.normal(ks[4], (1, D), jnp.float32)
    bk = scale * jax.random.normal(ks[5], (1, D), jnp.float32)
    bv = jnp.zeros((1, D), jnp.float32)
    bo = jnp.zeros((1, D), jnp.float32)
    w1 = scale * jax.random.normal(ks[6], (D, DFF), jnp.float32)
    bf1 = jnp.zeros((1, DFF), jnp.float32)
    w2 = scale * jax.random.normal(ks[7], (DFF, D), jnp.float32)
    bf2 = jnp.zeros((1, D), jnp.float32)
    return (a1, b1, wq, bq, wk, bk, wv, bv, wo, bo, a2, b2, w1, bf1, w2, bf2)


if __name__ == "__main__":
    key = jax.random.PRNGKey(0)
    kx, kp = jax.random.split(key)

    x = jax.random.normal(kx, (B, S, D), jnp.float32)
    # mask: 1 = attend, 0 = masked; mask out the last two key positions.
    mask = jnp.ones((B, S, S), jnp.float32).at[:, :, -2:].set(0.0)
    params = make_params(kp)

    # One-time packing (hoisted out of the per-call jit path).
    fslab, wslab = pack_inputs(params, mask)

    out = jax.block_until_ready(encoder_layer(x, fslab, wslab))
    assert out.shape == (B, S, D)

    # Matched-precision reference (same bf16 MXU operand math / folded SCALE as kernel).
    ref_bf16 = encoder_layer_ref(x, mask, params, bf16_operands=True)
    assert jnp.allclose(out, ref_bf16, atol=2e-2, rtol=2e-2), "mismatch vs matched-precision ref"
    # Exact f32 module math; kernel differs only by bf16 MXU operand precision.
    ref_f32 = encoder_layer_ref(x, mask, params, bf16_operands=False)
    assert jnp.allclose(out, ref_f32, atol=8e-2, rtol=8e-2), "mismatch vs exact f32 reference"

    print("KERNEL_OK")
</pallas_src>

<mosaic_0001>
module attributes {stable_mosaic.version = 11 : i64} {
  func.func @encoder_layer_kernel(%arg0: i32, %arg1: memref<16x32xf32, #tpu.memory_space<vmem>>, %arg2: memref<72x128xf32, #tpu.memory_space<vmem>>, %arg3: memref<32x384xbf16, #tpu.memory_space<vmem>>, %arg4: memref<16x32xf32, #tpu.memory_space<vmem>>) attributes {dimension_semantics = [#tpu.dimension_semantics<arbitrary>], iteration_bounds = array<i64: 1>, scalar_prefetch = 0 : i64, scratch_operands = 0 : i64, tpu.core_type = #tpu.core_type<tc>, window_params = [{pipeline_mode = #tpu.pipeline_mode<synchronous>, transform_indices = @transform_0, window_bounds = array<i64: 16, 32>}, {pipeline_mode = #tpu.pipeline_mode<synchronous>, transform_indices = @transform_1, window_bounds = array<i64: 72, 128>}, {pipeline_mode = #tpu.pipeline_mode<synchronous>, transform_indices = @transform_2, window_bounds = array<i64: 32, 384>}, {pipeline_mode = #tpu.pipeline_mode<synchronous>, transform_indices = @transform_3, window_bounds = array<i64: 16, 32>}]} {
    %c0 = arith.constant 0 : index
    %c0_0 = arith.constant 0 : index
    %0 = vector.load %arg1[%c0, %c0_0] : memref<16x32xf32, #tpu.memory_space<vmem>>, vector<16x32xf32>
    %c0_1 = arith.constant 0 : index
    %c0_2 = arith.constant 0 : index
    %1 = vector.load %arg2[%c0_1, %c0_2] : memref<72x128xf32, #tpu.memory_space<vmem>>, vector<72x128xf32>
    %c0_3 = arith.constant 0 : index
    %c0_4 = arith.constant 0 : index
    %2 = vector.load %arg3[%c0_3, %c0_4] : memref<32x384xbf16, #tpu.memory_space<vmem>>, vector<32x384xbf16>
    %3 = vector.extract_strided_slice %1 {offsets = [0, 0], sizes = [64, 16], strides = [1, 1]} : vector<72x128xf32> to vector<64x16xf32>
    %4 = vector.extract_strided_slice %1 {offsets = [64, 0], sizes = [1, 32], strides = [1, 1]} : vector<72x128xf32> to vector<1x32xf32>
    %5 = vector.extract_strided_slice %1 {offsets = [65, 0], sizes = [1, 32], strides = [1, 1]} : vector<72x128xf32> to vector<1x32xf32>
    %6 = vector.extract_strided_slice %1 {offsets = [66, 0], sizes = [1, 32], strides = [1, 1]} : vector<72x128xf32> to vector<1x32xf32>
    %7 = vector.extract_strided_slice %1 {offsets = [67, 0], sizes = [1, 32], strides = [1, 1]} : vector<72x128xf32> to vector<1x32xf32>
    %8 = vector.extract_strided_slice %1 {offsets = [68, 0], sizes = [1, 96], strides = [1, 1]} : vector<72x128xf32> to vector<1x96xf32>
    %9 = vector.extract_strided_slice %1 {offsets = [69, 0], sizes = [1, 32], strides = [1, 1]} : vector<72x128xf32> to vector<1x32xf32>
    %10 = vector.extract_strided_slice %1 {offsets = [70, 0], sizes = [1, 64], strides = [1, 1]} : vector<72x128xf32> to vector<1x64xf32>
    %11 = vector.extract_strided_slice %1 {offsets = [71, 0], sizes = [1, 32], strides = [1, 1]} : vector<72x128xf32> to vector<1x32xf32>
    %12 = vector.extract_strided_slice %2 {offsets = [0, 0], sizes = [32, 128], strides = [1, 1]} : vector<32x384xbf16> to vector<32x128xbf16>
    %13 = vector.extract_strided_slice %2 {offsets = [0, 128], sizes = [32, 64], strides = [1, 1]} : vector<32x384xbf16> to vector<32x64xbf16>
    %14 = vector.extract_strided_slice %2 {offsets = [0, 256], sizes = [32, 64], strides = [1, 1]} : vector<32x384xbf16> to vector<32x64xbf16>
    %cst = arith.constant dense<0.000000e+00> : vector<16xf32>
    %15 = vector.multi_reduction <add>, %0, %cst [1] : vector<16x32xf32> to vector<16xf32>
    %16 = vector.shape_cast %15 : vector<16xf32> to vector<16x1xf32>
    %cst_5 = arith.constant 3.200000e+01 : f32
    %17 = vector.broadcast %cst_5 : f32 to vector<16x1xf32>
    %18 = arith.divf %16, %17 : vector<16x1xf32>
    %19 = vector.broadcast %18 : vector<16x1xf32> to vector<16x32xf32>
    %20 = arith.subf %0, %19 : vector<16x32xf32>
    %21 = arith.mulf %20, %20 : vector<16x32xf32>
    %cst_6 = arith.constant dense<0.000000e+00> : vector<16xf32>
    %22 = vector.multi_reduction <add>, %21, %cst_6 [1] : vector<16x32xf32> to vector<16xf32>
    %23 = vector.shape_cast %22 : vector<16xf32> to vector<16x1xf32>
    %cst_7 = arith.constant 3.100000e+01 : f32
    %24 = vector.broadcast %cst_7 : f32 to vector<16x1xf32>
    %25 = arith.divf %23, %24 : vector<16x1xf32>
    %26 = vector.broadcast %18 : vector<16x1xf32> to vector<16x32xf32>
    %27 = arith.subf %0, %26 : vector<16x32xf32>
    %28 = vector.broadcast %4 : vector<1x32xf32> to vector<16x32xf32>
    %29 = arith.mulf %28, %27 : vector<16x32xf32>
    %30 = math.sqrt %25 : vector<16x1xf32>
    %cst_8 = arith.constant 9.99999997E-7 : f32
    %31 = vector.broadcast %cst_8 : f32 to vector<16x1xf32>
    %32 = arith.addf %30, %31 : vector<16x1xf32>
    %33 = vector.broadcast %32 : vector<16x1xf32> to vector<16x32xf32>
    %34 = arith.divf %29, %33 : vector<16x32xf32>
    %35 = vector.broadcast %5 : vector<1x32xf32> to vector<16x32xf32>
    %36 = arith.addf %34, %35 : vector<16x32xf32>
    %37 = arith.truncf %36 : vector<16x32xf32> to vector<16x32xbf16>
    %38 = vector.extract_strided_slice %12 {offsets = [0, 0], sizes = [32, 96], strides = [1, 1]} : vector<32x128xbf16> to vector<32x96xbf16>
    %cst_9 = arith.constant dense<0.000000e+00> : vector<16x96xf32>
    %39 = tpu.matmul %37, %38, %cst_9 {dimension_numbers = #tpu.dot_dimension_numbers<[1], [0], [0], [1], [0, 0, 1, 1], [], []>} : vector<16x32xbf16>, vector<32x96xbf16>, vector<16x96xf32> -> vector<16x96xf32>
    %40 = vector.broadcast %8 : vector<1x96xf32> to vector<16x96xf32>
    %41 = arith.addf %39, %40 : vector<16x96xf32>
    %42 = vector.extract_strided_slice %41 {offsets = [0, 0], sizes = [16, 32], strides = [1, 1]} : vector<16x96xf32> to vector<16x32xf32>
    %43 = arith.truncf %42 : vector<16x32xf32> to vector<16x32xbf16>
    %44 = vector.extract_strided_slice %41 {offsets = [0, 32], sizes = [16, 32], strides = [1, 1]} : vector<16x96xf32> to vector<16x32xf32>
    %45 = arith.truncf %44 : vector<16x32xf32> to vector<16x32xbf16>
    %46 = vector.extract_strided_slice %41 {offsets = [0, 64], sizes = [16, 32], strides = [1, 1]} : vector<16x96xf32> to vector<16x32xf32>
    %47 = arith.truncf %46 : vector<16x32xf32> to vector<16x32xbf16>
    %48 = vector.extract_strided_slice %43 {offsets = [0, 0], sizes = [16, 8], strides = [1, 1]} : vector<16x32xbf16> to vector<16x8xbf16>
    %49 = vector.extract_strided_slice %45 {offsets = [0, 0], sizes = [16, 8], strides = [1, 1]} : vector<16x32xbf16> to vector<16x8xbf16>
    %cst_10 = arith.constant dense<0.000000e+00> : vector<16x16xf32>
    %50 = tpu.matmul %48, %49, %cst_10 {dimension_numbers = #tpu.dot_dimension_numbers<[1], [1], [0], [0], [0, 0, 1, 0], [], []>} : vector<16x8xbf16>, vector<16x8xbf16>, vector<16x16xf32> -> vector<16x16xf32>
    %51 = vector.extract_strided_slice %43 {offsets = [0, 8], sizes = [16, 8], strides = [1, 1]} : vector<16x32xbf16> to vector<16x8xbf16>
    %52 = vector.extract_strided_slice %45 {offsets = [0, 8], sizes = [16, 8], strides = [1, 1]} : vector<16x32xbf16> to vector<16x8xbf16>
    %cst_11 = arith.constant dense<0.000000e+00> : vector<16x16xf32>
    %53 = tpu.matmul %51, %52, %cst_11 {dimension_numbers = #tpu.dot_dimension_numbers<[1], [1], [0], [0], [0, 0, 1, 0], [], []>} : vector<16x8xbf16>, vector<16x8xbf16>, vector<16x16xf32> -> vector<16x16xf32>
    %54 = vector.extract_strided_slice %43 {offsets = [0, 16], sizes = [16, 8], strides = [1, 1]} : vector<16x32xbf16> to vector<16x8xbf16>
    %55 = vector.extract_strided_slice %45 {offsets = [0, 16], sizes = [16, 8], strides = [1, 1]} : vector<16x32xbf16> to vector<16x8xbf16>
    %cst_12 = arith.constant dense<0.000000e+00> : vector<16x16xf32>
    %56 = tpu.matmul %54, %55, %cst_12 {dimension_numbers = #tpu.dot_dimension_numbers<[1], [1], [0], [0], [0, 0, 1, 0], [], []>} : vector<16x8xbf16>, vector<16x8xbf16>, vector<16x16xf32> -> vector<16x16xf32>
    %57 = vector.extract_strided_slice %43 {offsets = [0, 24], sizes = [16, 8], strides = [1, 1]} : vector<16x32xbf16> to vector<16x8xbf16>
    %58 = vector.extract_strided_slice %45 {offsets = [0, 24], sizes = [16, 8], strides = [1, 1]} : vector<16x32xbf16> to vector<16x8xbf16>
    %cst_13 = arith.constant dense<0.000000e+00> : vector<16x16xf32>
    %59 = tpu.matmul %57, %58, %cst_13 {dimension_numbers = #tpu.dot_dimension_numbers<[1], [1], [0], [0], [0, 0, 1, 0], [], []>} : vector<16x8xbf16>, vector<16x8xbf16>, vector<16x16xf32> -> vector<16x16xf32>
    %60 = tpu.concatenate %50, %53, %56, %59 in 0 : vector<16x16xf32>, vector<16x16xf32>, vector<16x16xf32>, vector<16x16xf32> -> vector<64x16xf32>
    %61 = arith.addf %60, %3 : vector<64x16xf32>
    %cst_14 = arith.constant dense<0xFF800000> : vector<64xf32>
    %62 = vector.multi_reduction <maximumf>, %61, %cst_14 [1] : vector<64x16xf32> to vector<64xf32>
    %63 = vector.shape_cast %62 : vector<64xf32> to vector<64x1xf32>
    %64 = vector.broadcast %63 : vector<64x1xf32> to vector<64x16xf32>
    %65 = arith.subf %61, %64 : vector<64x16xf32>
    %66 = math.exp %65 : vector<64x16xf32>
    %cst_15 = arith.constant dense<0.000000e+00> : vector<64xf32>
    %67 = vector.multi_reduction <add>, %66, %cst_15 [1] : vector<64x16xf32> to vector<64xf32>
    %68 = vector.shape_cast %67 : vector<64xf32> to vector<64x1xf32>
    %69 = tpu.reciprocal %68 {approx = true} : vector<64x1xf32> -> vector<64x1xf32>
    %70 = vector.broadcast %69 : vector<64x1xf32> to vector<64x16xf32>
    %71 = arith.mulf %66, %70 : vector<64x16xf32>
    %72 = arith.truncf %71 : vector<64x16xf32> to vector<64x16xbf16>
    %73 = vector.extract_strided_slice %72 {offsets = [0, 0], sizes = [16, 16], strides = [1, 1]} : vector<64x16xbf16> to vector<16x16xbf16>
    %74 = vector.extract_strided_slice %47 {offsets = [0, 0], sizes = [16, 8], strides = [1, 1]} : vector<16x32xbf16> to vector<16x8xbf16>
    %cst_16 = arith.constant dense<0.000000e+00> : vector<16x8xf32>
    %75 = tpu.matmul %73, %74, %cst_16 {dimension_numbers = #tpu.dot_dimension_numbers<[1], [0], [0], [1], [0, 0, 1, 1], [], []>} : vector<16x16xbf16>, vector<16x8xbf16>, vector<16x8xf32> -> vector<16x8xf32>
    %76 = vector.extract_strided_slice %72 {offsets = [16, 0], sizes = [16, 16], strides = [1, 1]} : vector<64x16xbf16> to vector<16x16xbf16>
    %77 = vector.extract_strided_slice %47 {offsets = [0, 8], sizes = [16, 8], strides = [1, 1]} : vector<16x32xbf16> to vector<16x8xbf16>
    %cst_17 = arith.constant dense<0.000000e+00> : vector<16x8xf32>
    %78 = tpu.matmul %76, %77, %cst_17 {dimension_numbers = #tpu.dot_dimension_numbers<[1], [0], [0], [1], [0, 0, 1, 1], [], []>} : vector<16x16xbf16>, vector<16x8xbf16>, vector<16x8xf32> -> vector<16x8xf32>
    %79 = vector.extract_strided_slice %72 {offsets = [32, 0], sizes = [16, 16], strides = [1, 1]} : vector<64x16xbf16> to vector<16x16xbf16>
    %80 = vector.extract_strided_slice %47 {offsets = [0, 16], sizes = [16, 8], strides = [1, 1]} : vector<16x32xbf16> to vector<16x8xbf16>
    %cst_18 = arith.constant dense<0.000000e+00> : vector<16x8xf32>
    %81 = tpu.matmul %79, %80, %cst_18 {dimension_numbers = #tpu.dot_dimension_numbers<[1], [0], [0], [1], [0, 0, 1, 1], [], []>} : vector<16x16xbf16>, vector<16x8xbf16>, vector<16x8xf32> -> vector<16x8xf32>
    %82 = vector.extract_strided_slice %72 {offsets = [48, 0], sizes = [16, 16], strides = [1, 1]} : vector<64x16xbf16> to vector<16x16xbf16>
    %83 = vector.extract_strided_slice %47 {offsets = [0, 24], sizes = [16, 8], strides = [1, 1]} : vector<16x32xbf16> to vector<16x8xbf16>
    %cst_19 = arith.constant dense<0.000000e+00> : vector<16x8xf32>
    %84 = tpu.matmul %82, %83, %cst_19 {dimension_numbers = #tpu.dot_dimension_numbers<[1], [0], [0], [1], [0, 0, 1, 1], [], []>} : vector<16x16xbf16>, vector<16x8xbf16>, vector<16x8xf32> -> vector<16x8xf32>
    %85 = tpu.concatenate %75, %78, %81, %84 in 1 : vector<16x8xf32>, vector<16x8xf32>, vector<16x8xf32>, vector<16x8xf32> -> vector<16x32xf32>
    %86 = arith.truncf %85 : vector<16x32xf32> to vector<16x32xbf16>
    %87 = vector.extract_strided_slice %12 {offsets = [0, 96], sizes = [32, 32], strides = [1, 1]} : vector<32x128xbf16> to vector<32x32xbf16>
    %cst_20 = arith.constant dense<0.000000e+00> : vector<16x32xf32>
    %88 = tpu.matmul %86, %87, %cst_20 {dimension_numbers = #tpu.dot_dimension_numbers<[1], [0], [0], [1], [0, 0, 1, 1], [], []>} : vector<16x32xbf16>, vector<32x32xbf16>, vector<16x32xf32> -> vector<16x32xf32>
    %89 = vector.broadcast %9 : vector<1x32xf32> to vector<16x32xf32>
    %90 = arith.addf %88, %89 : vector<16x32xf32>
    %91 = arith.addf %0, %90 : vector<16x32xf32>
    %cst_21 = arith.constant dense<0.000000e+00> : vector<16xf32>
    %92 = vector.multi_reduction <add>, %91, %cst_21 [1] : vector<16x32xf32> to vector<16xf32>
    %93 = vector.shape_cast %92 : vector<16xf32> to vector<16x1xf32>
    %cst_22 = arith.constant 3.200000e+01 : f32
    %94 = vector.broadcast %cst_22 : f32 to vector<16x1xf32>
    %95 = arith.divf %93, %94 : vector<16x1xf32>
    %96 = vector.broadcast %95 : vector<16x1xf32> to vector<16x32xf32>
    %97 = arith.subf %91, %96 : vector<16x32xf32>
    %98 = arith.mulf %97, %97 : vector<16x32xf32>
    %cst_23 = arith.constant dense<0.000000e+00> : vector<16xf32>
    %99 = vector.multi_reduction <add>, %98, %cst_23 [1] : vector<16x32xf32> to vector<16xf32>
    %100 = vector.shape_cast %99 : vector<16xf32> to vector<16x1xf32>
    %cst_24 = arith.constant 3.100000e+01 : f32
    %101 = vector.broadcast %cst_24 : f32 to vector<16x1xf32>
    %102 = arith.divf %100, %101 : vector<16x1xf32>
    %103 = vector.broadcast %95 : vector<16x1xf32> to vector<16x32xf32>
    %104 = arith.subf %91, %103 : vector<16x32xf32>
    %105 = vector.broadcast %6 : vector<1x32xf32> to vector<16x32xf32>
    %106 = arith.mulf %105, %104 : vector<16x32xf32>
    %107 = math.sqrt %102 : vector<16x1xf32>
    %cst_25 = arith.constant 9.99999997E-7 : f32
    %108 = vector.broadcast %cst_25 : f32 to vector<16x1xf32>
    %109 = arith.addf %107, %108 : vector<16x1xf32>
    %110 = vector.broadcast %109 : vector<16x1xf32> to vector<16x32xf32>
    %111 = arith.divf %106, %110 : vector<16x32xf32>
    %112 = vector.broadcast %7 : vector<1x32xf32> to vector<16x32xf32>
    %113 = arith.addf %111, %112 : vector<16x32xf32>
    %114 = arith.truncf %113 : vector<16x32xf32> to vector<16x32xbf16>
    %cst_26 = arith.constant dense<0.000000e+00> : vector<16x64xf32>
    %115 = tpu.matmul %114, %13, %cst_26 {dimension_numbers = #tpu.dot_dimension_numbers<[1], [0], [0], [1], [0, 0, 1, 1], [], []>} : vector<16x32xbf16>, vector<32x64xbf16>, vector<16x64xf32> -> vector<16x64xf32>
    %116 = vector.broadcast %10 : vector<1x64xf32> to vector<16x64xf32>
    %117 = arith.addf %115, %116 : vector<16x64xf32>
    %cst_27 = arith.constant 0.000000e+00 : f32
    %118 = vector.broadcast %cst_27 : f32 to vector<16x64xf32>
    %119 = arith.maximumf %117, %118 : vector<16x64xf32>
    %120 = arith.truncf %119 : vector<16x64xf32> to vector<16x64xbf16>
    %cst_28 = arith.constant dense<0.000000e+00> : vector<16x32xf32>
    %121 = tpu.matmul %120, %14, %cst_28 {dimension_numbers = #tpu.dot_dimension_numbers<[1], [1], [0], [0], [0, 0, 1, 0], [], []>} : vector<16x64xbf16>, vector<32x64xbf16>, vector<16x32xf32> -> vector<16x32xf32>
    %122 = vector.broadcast %11 : vector<1x32xf32> to vector<16x32xf32>
    %123 = arith.addf %121, %122 : vector<16x32xf32>
    %124 = arith.addf %91, %123 : vector<16x32xf32>
    %c0_29 = arith.constant 0 : index
    %c0_30 = arith.constant 0 : index
    %125 = vector.load %arg4[%c0_29, %c0_30] : memref<16x32xf32, #tpu.memory_space<vmem>>, vector<16x32xf32>
    tpu.vector_store %arg4[%c0_29, %c0_30], %124 {strides = array<i32>} : memref<16x32xf32, #tpu.memory_space<vmem>>, vector<16x32xf32>,
    return
  }
  func.func @transform_0(%arg0: i32) -> (i32, i32) {
    %c0_i32 = arith.constant 0 : i32
    %c0_i32_0 = arith.constant 0 : i32
    %c0_i32_1 = arith.constant 0 : i32
    return %c0_i32, %c0_i32_0 : i32, i32
  }
  func.func @transform_1(%arg0: i32) -> (i32, i32) {
    %c0_i32 = arith.constant 0 : i32
    %c0_i32_0 = arith.constant 0 : i32
    %c0_i32_1 = arith.constant 0 : i32
    return %c0_i32, %c0_i32_0 : i32, i32
  }
  func.func @transform_2(%arg0: i32) -> (i32, i32) {
    %c0_i32 = arith.constant 0 : i32
    %c0_i32_0 = arith.constant 0 : i32
    %c0_i32_1 = arith.constant 0 : i32
    return %c0_i32, %c0_i32_0 : i32, i32
  }
  func.func @transform_3(%arg0: i32) -> (i32, i32) {
    %c0_i32 = arith.constant 0 : i32
    %c0_i32_0 = arith.constant 0 : i32
    %c0_i32_1 = arith.constant 0 : i32
    return %c0_i32, %c0_i32_0 : i32, i32
  }
}

</mosaic_0001>

<llo_original>
// kernel: encoder_layer.1
$region0: #{encoder_layer.1}
  #allocation0 [shape = 'u32[]', space=smem, size = 0x4, offset = 0x4, fixed_abs, tag = 'smem constant byte address 0x4 - core index']
  #allocation1 [shape = 'u32[144,128]{1,0:T(1,128)}', space=vmem, size = 0x12000, scoped, tag = 'internal scratch']
  %s0 = inlined_call_operand.hbm [shape: f32[16,32], index: 0, kind: input, shape index: {}]
  %s1 = inlined_call_operand.hbm [shape: f32[72,128], index: 1, kind: input, shape index: {}]
  %s2 = inlined_call_operand.hbm [shape: bf16[32,384], index: 2, kind: input, shape index: {}]
  %s3 = inlined_call_operand.hbm [shape: f32[16,32], index: 3, kind: output, shape index: {}]
  %s4 = sld [smem:[#allocation0]]
  $region34: #{encoder_layer.1} parent=0
    _
  %s6 = ssub.s32 1, %s4
  %s7 = scalar_select 0, %s6, %s4
  $region1: #{encoder_layer.1} parent=0
    #allocation2 [shape = 'u8[8192]{0}', space=vmem, size = 0x2000, scoped, tag = 'input window, operand 0, single buffered']
    #allocation3 [shape = 's32[1]{0}', space=sflag, size = 0x4, scoped, tag = 'scoped memory for encoder_layer.1']
    #allocation4 [shape = 's32[1]{0}', space=sflag, size = 0x4, scoped, tag = 'scoped memory for encoder_layer.1']
    #allocation5 [shape = 'u8[36864]{0}', space=vmem, size = 0x9000, scoped, tag = 'input window, operand 1, single buffered']
    #allocation6 [shape = 's32[1]{0}', space=sflag, size = 0x4, scoped, tag = 'scoped memory for encoder_layer.1']
    #allocation7 [shape = 'u8[24576]{0}', space=vmem, size = 0x6000, scoped, tag = 'input window, operand 2, single buffered']
    #allocation8 [shape = 'u8[8192]{0}', space=vmem, size = 0x2000, scoped, tag = 'output window, operand 0, single buffered']
    %8 = vsyncpa [#allocation3], 0
    %9 = vsyncpa [#allocation6], 0
    %10 = vsyncpa [#allocation4], 0
    // Predicated region
    $region2: #{encoder_layer.1} parent=1 // pred_check
      _
    $region3: #{encoder_layer.1} parent=1 // pred_check_branch
      %12 = sbr.rel (0) target = $region5
    $region4: #{encoder_layer.1} parent=1 // pred_region
      %s14 = ssub.s32 256, 256
      %15 = vsyncadd [#allocation3], %s14
      %s16 = sshll.u32 [#allocation2], 4
      %s17 = int_to_ptr.vmem [resolvable:$true] %s16
      %22 = dma.hbm_to_vmem [thread:$0]  %s0, 256, %s17, [#allocation3], 128, 128, 8
    $region5: #{encoder_layer.1} parent=1 // pred_fallthru
      _
    // Predicated region
    $region6: #{encoder_layer.1} parent=1 // pred_check
      _
    $region7: #{encoder_layer.1} parent=1 // pred_check_branch
      %24 = sbr.rel (0) target = $region9
    $region8: #{encoder_layer.1} parent=1 // pred_region
      %s26 = ssub.s32 1152, 1152
      %27 = vsyncadd [#allocation6], %s26
      %s28 = sshll.u32 [#allocation5], 4
      %s29 = int_to_ptr.vmem [resolvable:$true] %s28
      %34 = dma.hbm_to_vmem [thread:$0]  %s1, 1152, %s29, [#allocation6], 128, 128, 8
    $region9: #{encoder_layer.1} parent=1 // pred_fallthru
      _
    // Predicated region
    $region10: #{encoder_layer.1} parent=1 // pred_check
      _
    $region11: #{encoder_layer.1} parent=1 // pred_check_branch
      %36 = sbr.rel (0) target = $region13
    $region12: #{encoder_layer.1} parent=1 // pred_region
      %s38 = ssub.s32 768, 768
      %39 = vsyncadd [#allocation6], %s38
      %s40 = sshll.u32 [#allocation7], 4
      %s41 = int_to_ptr.vmem [resolvable:$true] %s40
      %46 = dma.hbm_to_vmem [thread:$0]  %s2, 768, %s41, [#allocation6], 192, 192, 12
    $region13: #{encoder_layer.1} parent=1 // pred_fallthru
      _
    // Predicated region
    $region14: #{encoder_layer.1} parent=1 // pred_check
      _
    $region15: #{encoder_layer.1} parent=1 // pred_check_branch
      %48 = sbr.rel (0) target = $region17
    $region16: #{encoder_layer.1} parent=1 // pred_region
      %49 = dma.done [#allocation3], 256
    $region17: #{encoder_layer.1} parent=1 // pred_fallthru
      _
    // Predicated region
    $region18: #{encoder_layer.1} parent=1 // pred_check
      _
    $region19: #{encoder_layer.1} parent=1 // pred_check_branch
      %51 = sbr.rel (0) target = $region21
    $region20: #{encoder_layer.1} parent=1 // pred_region
      %52 = dma.done [#allocation6], 1152
    $region21: #{encoder_layer.1} parent=1 // pred_fallthru
      _
    // Predicated region
    $region22: #{encoder_layer.1} parent=1 // pred_check
      _
    $region23: #{encoder_layer.1} parent=1 // pred_check_branch
      %54 = sbr.rel (0) target = $region25
    $region24: #{encoder_layer.1} parent=1 // pred_region
      %55 = dma.done [#allocation6], 768
    $region25: #{encoder_layer.1} parent=1 // pred_fallthru
      _
    %v57 = vld [vmem:[#allocation2] sm:$0xff]
    %v58 = vld [vmem:[#allocation2 + $0x8] sm:$0xff]
    %v59 = vld [vmem:[#allocation5] sm:$0xff]
    %v60 = vld [vmem:[#allocation5 + $0x8] sm:$0xff]
    %v61 = vld [vmem:[#allocation5 + $0x10] sm:$0xff]
    %v62 = vld [vmem:[#allocation5 + $0x18] sm:$0xff]
    %v63 = vld [vmem:[#allocation5 + $0x20] sm:$0xff]
    %v64 = vld [vmem:[#allocation5 + $0x28] sm:$0xff]
    %v65 = vld [vmem:[#allocation5 + $0x30] sm:$0xff]
    %v66 = vld [vmem:[#allocation5 + $0x38] sm:$0xff]
    %v67 = vld [vmem:[#allocation5 + $0x40] sm:$0xff]
    %v68 = vld [vmem:[#allocation7] sm:$0xff]
    %v69 = vld [vmem:[#allocation7 + $0x8] sm:$0xf]
    %v70 = vld [vmem:[#allocation7 + $0xc] sm:$0xff]
    %v71 = vld [vmem:[#allocation7 + $0x14] sm:$0xf]
    %v72 = vld [vmem:[#allocation7 + $0x18] sm:$0xff]
    %v73 = vld [vmem:[#allocation7 + $0x20] sm:$0xf]
    %v74 = vld [vmem:[#allocation7 + $0x24] sm:$0xff]
    %v75 = vld [vmem:[#allocation7 + $0x2c] sm:$0xf]
    %vm76 = vcmask 261120
    %v77 = vsel %vm76, %v57, 0.0
    %78 = vadd.xlane.f32.xlu0 %v77
    %v79 = vpop.xlane.xlu0 %78
    %v80 = vsel %vm76, %v58, 0.0
    %81 = vadd.xlane.f32.xlu0 %v80
    %v82 = vpop.xlane.xlu0 %81
    %v83 = vrcp.pop 32.0
    %v84 = vmul.f32 %v79, %v83
    %v85 = vmul.f32 %v82, %v83
    %v86 = vsub.f32 %v57, %v84
    %v87 = vsub.f32 %v58, %v85
    %v88 = vmul.f32 %v86, %v86
    %v89 = vmul.f32 %v87, %v87
    %v90 = vsel %vm76, %v88, 0.0
    %91 = vadd.xlane.f32.xlu0 %v90
    %v92 = vpop.xlane.xlu0 %91
    %v93 = vsel %vm76, %v89, 0.0
    %94 = vadd.xlane.f32.xlu0 %v93
    %v95 = vpop.xlane.xlu0 %94
    %v96 = vrcp.pop 31.0
    %v97 = vmul.f32 %v92, %v96
    %v98 = vmul.f32 %v95, %v96
    %v99 = vlaneseq
    %v100 = vshrl.u32 %v99, 7
    %v101 = vsub.s32 0, %v100
    %v102 = vrot.slane %v67, %v101
    %v103 = vmul.f32 %v102, %v86
    %v104 = vmul.f32 %v102, %v87
    %v105 = vrsqrt.pop %v97
    %v106 = vmul.f32 %v97, %v105
    %vm107 = vcmp.eq.f32.partialorder %v97, inf
    %v108 = vsel %vm107, %v97, %v106
    %vm109 = vcmp.eq.f32.partialorder %v97, 0.0
    %v110 = vand.u32 %v97, 2147483648
    %v111 = vsel %vm109, %v110, %v108
    %v112 = vrsqrt.pop %v98
    %v113 = vmul.f32 %v98, %v112
    %vm114 = vcmp.eq.f32.partialorder %v98, inf
    %v115 = vsel %vm114, %v98, %v113
    %vm116 = vcmp.eq.f32.partialorder %v98, 0.0
    %v117 = vand.u32 %v98, 2147483648
    %v118 = vsel %vm116, %v117, %v115
    %v119 = vadd.f32 %v111, 1e-06
    %v120 = vadd.f32 %v118, 1e-06
    %v121 = vrcp.pop %v119
    %v122 = vmul.f32 %v103, %v121
    %v123 = vrcp.pop %v120
    %v124 = vmul.f32 %v104, %v123
    %v125 = vlaneseq
    %v126 = vshrl.u32 %v125, 7
    %v127 = vsub.s32 1, %v126
    %v128 = vrot.slane %v67, %v127
    %v129 = vadd.f32 %v122, %v128
    %v130 = vadd.f32 %v124, %v128
    %v131 = vpack.c.bf16 %v130, %v129
    %v132 = vlaneseq
    %v133 = vshrl.u32 %v132, 7
    %v134 = vsub.s32 4, %v133
    %v135 = vrot.slane %v67, %v134
    %v140 = vunpack.c.l.b16 %v68
    %v141 = vunpack.c.l.b16 %v70
    %v142 = vunpack.c.l.b16 %v72
    %v143 = vunpack.c.l.b16 %v74
    %v144 = vpack.c.b16 %v141, %v140
    %v145 = vpack.c.b16 %v143, %v142
    %v149 = vsel %vm76, %v131, 0
    %151 = vmatprep.subr.bf16.mxu0 0
    %152 = vmatpush1.bf16.msra.mxu0 %v144
    %153 = vmatprep.subr.bf16.mxu0 0
    %154 = vmatpush1.bf16.msra.mxu0 %v145
    %155 = vmatprep.subr.bf16.mxu0 0
    %156 = vmatpush1.bf16.msra.mxu0 0
    %157 = vmatprep.subr.bf16.mxu0 0
    %158 = vmatpush1.bf16.msra.mxu0 0
    %159 = vmatprep.subr.bf16.mxu0 0
    %160 = vmatpush1.bf16.msra.mxu0 0
    %161 = vmatprep.subr.bf16.mxu0 0
    %162 = vmatpush1.bf16.msra.mxu0 0
    %163 = vmatprep.subr.bf16.mxu0 0
    %164 = vmatpush1.bf16.msra.mxu0 0
    %165 = vmatprep.subr.bf16.mxu0 0
    %166 = vmatpush1.bf16.msra.mxu0 0
    %167 = vmatprep.subr.bf16.mxu0 0
    %168 = vmatpush1.bf16.msra.mxu0 0
    %169 = vmatprep.subr.bf16.mxu0 0
    %170 = vmatpush1.bf16.msra.mxu0 0
    %171 = vmatprep.subr.bf16.mxu0 0
    %172 = vmatpush1.bf16.msra.mxu0 0
    %173 = vmatprep.subr.bf16.mxu0 0
    %174 = vmatpush1.bf16.msra.mxu0 0
    %175 = vmatprep.subr.bf16.mxu0 0
    %176 = vmatpush1.bf16.msra.mxu0 0
    %177 = vmatprep.subr.bf16.mxu0 0
    %178 = vmatpush1.bf16.msra.mxu0 0
    %179 = vmatprep.subr.bf16.mxu0 0
    %180 = vmatpush1.bf16.msra.mxu0 0
    %181 = vmatprep.subr.bf16.mxu0 0
    %182 = vmatpush1.bf16.msra.mxu0 0
    %183 = vmatprep.mubr.bf16.mxu0 0
    %184 = vmatmul.mubr.bf16.gmra.mrb[0].mxu0 %v149
    %v185 = vpop.f32.mrb[0].mxu0
    %v186 = vadd.f32 %v135, %v185
    %v187 = vpop.f32.mrb[0].mxu0
    %v188 = vpop.f32.mrb[0].mxu0
    %v189 = vadd.f32 %v135, %v188
    %v190 = vpop.f32.mrb[0].mxu0
    %191 = vdwg.mxu0
    %v192 = vpack.c.bf16 %v189, %v186
    %194 = vrot.lane.b32.xlu0 %v192, 96
    %v195 = vpop.permute.xlu0 %194
    %vm196 = vcmask 64512
    %v198 = vsel %vm196, %v192, 0
    %v201 = vsel %vm196, %v195, 0
    %203 = vmatprep.subr.bf16.mxu0 0
    %204 = vmatpush1.bf16.xpose.msra.mxu0 %v201
    %205 = vmatprep.subr.bf16.mxu0 0
    %206 = vmatpush1.bf16.xpose.msra.mxu0 0
    %207 = vmatprep.subr.bf16.mxu0 0
    %208 = vmatpush1.bf16.xpose.msra.mxu0 0
    %209 = vmatprep.subr.bf16.mxu0 0
    %210 = vmatpush1.bf16.xpose.msra.mxu0 0
    %211 = vmatprep.subr.bf16.mxu0 0
    %212 = vmatpush1.bf16.xpose.msra.mxu0 0
    %213 = vmatprep.subr.bf16.mxu0 0
    %214 = vmatpush1.bf16.xpose.msra.mxu0 0
    %215 = vmatprep.subr.bf16.mxu0 0
    %216 = vmatpush1.bf16.xpose.msra.mxu0 0
    %217 = vmatprep.subr.bf16.mxu0 0
    %218 = vmatpush1.bf16.xpose.msra.mxu0 0
    %219 = vmatprep.subr.bf16.mxu0 0
    %220 = vmatpush1.bf16.xpose.msra.mxu0 0
    %221 = vmatprep.subr.bf16.mxu0 0
    %222 = vmatpush1.bf16.xpose.msra.mxu0 0
    %223 = vmatprep.subr.bf16.mxu0 0
    %224 = vmatpush1.bf16.xpose.msra.mxu0 0
    %225 = vmatprep.subr.bf16.mxu0 0
    %226 = vmatpush1.bf16.xpose.msra.mxu0 0
    %227 = vmatprep.subr.bf16.mxu0 0
    %228 = vmatpush1.bf16.xpose.msra.mxu0 0
    %229 = vmatprep.subr.bf16.mxu0 0
    %230 = vmatpush1.bf16.xpose.msra.mxu0 0
    %231 = vmatprep.subr.bf16.mxu0 0
    %232 = vmatpush1.bf16.xpose.msra.mxu0 0
    %233 = vmatprep.subr.bf16.mxu0 0
    %234 = vmatpush1.bf16.xpose.msra.mxu0 0
    %235 = vmatprep.mubr.bf16.mxu0 0
    %236 = vmatmul.mubr.bf16.gmra.mrb[0].mxu0 %v198
    %v237 = vpop.f32.mrb[0].mxu0
    %v238 = vadd.f32 0.0, %v237
    %v239 = vpop.f32.mrb[0].mxu0
    %v240 = vpop.f32.mrb[0].mxu0
    %v241 = vadd.f32 0.0, %v240
    %v242 = vpop.f32.mrb[0].mxu0
    %243 = vdwg.mxu0
    %244 = vrot.lane.b32.xlu0 %v192, 120
    %v245 = vpop.permute.xlu0 %244
    %246 = vrot.lane.b32.xlu0 %v192, 88
    %v247 = vpop.permute.xlu0 %246
    %v249 = vsel %vm196, %v245, 0
    %v252 = vsel %vm196, %v247, 0
    %254 = vmatprep.subr.bf16.mxu0 0
    %255 = vmatpush1.bf16.xpose.msra.mxu0 %v252
    %256 = vmatprep.subr.bf16.mxu0 0
    %257 = vmatpush1.bf16.xpose.msra.mxu0 0
    %258 = vmatprep.subr.bf16.mxu0 0
    %259 = vmatpush1.bf16.xpose.msra.mxu0 0
    %260 = vmatprep.subr.bf16.mxu0 0
    %261 = vmatpush1.bf16.xpose.msra.mxu0 0
    %262 = vmatprep.subr.bf16.mxu0 0
    %263 = vmatpush1.bf16.xpose.msra.mxu0 0
    %264 = vmatprep.subr.bf16.mxu0 0
    %265 = vmatpush1.bf16.xpose.msra.mxu0 0
    %266 = vmatprep.subr.bf16.mxu0 0
    %267 = vmatpush1.bf16.xpose.msra.mxu0 0
    %268 = vmatprep.subr.bf16.mxu0 0
    %269 = vmatpush1.bf16.xpose.msra.mxu0 0
    %270 = vmatprep.subr.bf16.mxu0 0
    %271 = vmatpush1.bf16.xpose.msra.mxu0 0
    %272 = vmatprep.subr.bf16.mxu0 0
    %273 = vmatpush1.bf16.xpose.msra.mxu0 0
    %274 = vmatprep.subr.bf16.mxu0 0
    %275 = vmatpush1.bf16.xpose.msra.mxu0 0
    %276 = vmatprep.subr.bf16.mxu0 0
    %277 = vmatpush1.bf16.xpose.msra.mxu0 0
    %278 = vmatprep.subr.bf16.mxu0 0
    %279 = vmatpush1.bf16.xpose.msra.mxu0 0
    %280 = vmatprep.subr.bf16.mxu0 0
    %281 = vmatpush1.bf16.xpose.msra.mxu0 0
    %282 = vmatprep.subr.bf16.mxu0 0
    %283 = vmatpush1.bf16.xpose.msra.mxu0 0
    %284 = vmatprep.subr.bf16.mxu0 0
    %285 = vmatpush1.bf16.xpose.msra.mxu0 0
    %286 = vmatprep.mubr.bf16.mxu0 0
    %287 = vmatmul.mubr.bf16.gmra.mrb[0].mxu0 %v249
    %v288 = vpop.f32.mrb[0].mxu0
    %v289 = vadd.f32 0.0, %v288
    %v290 = vpop.f32.mrb[0].mxu0
    %v291 = vpop.f32.mrb[0].mxu0
    %v292 = vadd.f32 0.0, %v291
    %v293 = vpop.f32.mrb[0].mxu0
    %294 = vdwg.mxu0
    %295 = vrot.lane.b32.xlu0 %v192, 112
    %v296 = vpop.permute.xlu0 %295
    %297 = vrot.lane.b32.xlu0 %v192, 80
    %v298 = vpop.permute.xlu0 %297
    %v300 = vsel %vm196, %v296, 0
    %v303 = vsel %vm196, %v298, 0
    %305 = vmatprep.subr.bf16.mxu0 0
    %306 = vmatpush1.bf16.xpose.msra.mxu0 %v303
    %307 = vmatprep.subr.bf16.mxu0 0
    %308 = vmatpush1.bf16.xpose.msra.mxu0 0
    %309 = vmatprep.subr.bf16.mxu0 0
    %310 = vmatpush1.bf16.xpose.msra.mxu0 0
    %311 = vmatprep.subr.bf16.mxu0 0
    %312 = vmatpush1.bf16.xpose.msra.mxu0 0
    %313 = vmatprep.subr.bf16.mxu0 0
    %314 = vmatpush1.bf16.xpose.msra.mxu0 0
    %315 = vmatprep.subr.bf16.mxu0 0
    %316 = vmatpush1.bf16.xpose.msra.mxu0 0
    %317 = vmatprep.subr.bf16.mxu0 0
    %318 = vmatpush1.bf16.xpose.msra.mxu0 0
    %319 = vmatprep.subr.bf16.mxu0 0
    %320 = vmatpush1.bf16.xpose.msra.mxu0 0
    %321 = vmatprep.subr.bf16.mxu0 0
    %322 = vmatpush1.bf16.xpose.msra.mxu0 0
    %323 = vmatprep.subr.bf16.mxu0 0
    %324 = vmatpush1.bf16.xpose.msra.mxu0 0
    %325 = vmatprep.subr.bf16.mxu0 0
    %326 = vmatpush1.bf16.xpose.msra.mxu0 0
    %327 = vmatprep.subr.bf16.mxu0 0
    %328 = vmatpush1.bf16.xpose.msra.mxu0 0
    %329 = vmatprep.subr.bf16.mxu0 0
    %330 = vmatpush1.bf16.xpose.msra.mxu0 0
    %331 = vmatprep.subr.bf16.mxu0 0
    %332 = vmatpush1.bf16.xpose.msra.mxu0 0
    %333 = vmatprep.subr.bf16.mxu0 0
    %334 = vmatpush1.bf16.xpose.msra.mxu0 0
    %335 = vmatprep.subr.bf16.mxu0 0
    %336 = vmatpush1.bf16.xpose.msra.mxu0 0
    %337 = vmatprep.mubr.bf16.mxu0 0
    %338 = vmatmul.mubr.bf16.gmra.mrb[0].mxu0 %v300
    %v339 = vpop.f32.mrb[0].mxu0
    %v340 = vadd.f32 0.0, %v339
    %v341 = vpop.f32.mrb[0].mxu0
    %v342 = vpop.f32.mrb[0].mxu0
    %v343 = vadd.f32 0.0, %v342
    %v344 = vpop.f32.mrb[0].mxu0
    %345 = vdwg.mxu0
    %346 = vrot.lane.b32.xlu0 %v192, 104
    %v347 = vpop.permute.xlu0 %346
    %348 = vrot.lane.b32.xlu0 %v192, 72
    %v349 = vpop.permute.xlu0 %348
    %v351 = vsel %vm196, %v347, 0
    %v354 = vsel %vm196, %v349, 0
    %356 = vmatprep.subr.bf16.mxu0 0
    %357 = vmatpush1.bf16.xpose.msra.mxu0 %v354
    %358 = vmatprep.subr.bf16.mxu0 0
    %359 = vmatpush1.bf16.xpose.msra.mxu0 0
    %360 = vmatprep.subr.bf16.mxu0 0
    %361 = vmatpush1.bf16.xpose.msra.mxu0 0
    %362 = vmatprep.subr.bf16.mxu0 0
    %363 = vmatpush1.bf16.xpose.msra.mxu0 0
    %364 = vmatprep.subr.bf16.mxu0 0
    %365 = vmatpush1.bf16.xpose.msra.mxu0 0
    %366 = vmatprep.subr.bf16.mxu0 0
    %367 = vmatpush1.bf16.xpose.msra.mxu0 0
    %368 = vmatprep.subr.bf16.mxu0 0
    %369 = vmatpush1.bf16.xpose.msra.mxu0 0
    %370 = vmatprep.subr.bf16.mxu0 0
    %371 = vmatpush1.bf16.xpose.msra.mxu0 0
    %372 = vmatprep.subr.bf16.mxu0 0
    %373 = vmatpush1.bf16.xpose.msra.mxu0 0
    %374 = vmatprep.subr.bf16.mxu0 0
    %375 = vmatpush1.bf16.xpose.msra.mxu0 0
    %376 = vmatprep.subr.bf16.mxu0 0
    %377 = vmatpush1.bf16.xpose.msra.mxu0 0
    %378 = vmatprep.subr.bf16.mxu0 0
    %379 = vmatpush1.bf16.xpose.msra.mxu0 0
    %380 = vmatprep.subr.bf16.mxu0 0
    %381 = vmatpush1.bf16.xpose.msra.mxu0 0
    %382 = vmatprep.subr.bf16.mxu0 0
    %383 = vmatpush1.bf16.xpose.msra.mxu0 0
    %384 = vmatprep.subr.bf16.mxu0 0
    %385 = vmatpush1.bf16.xpose.msra.mxu0 0
    %386 = vmatprep.subr.bf16.mxu0 0
    %387 = vmatpush1.bf16.xpose.msra.mxu0 0
    %388 = vmatprep.mubr.bf16.mxu0 0
    %389 = vmatmul.mubr.bf16.gmra.mrb[0].mxu0 %v351
    %v390 = vpop.f32.mrb[0].mxu0
    %v391 = vadd.f32 0.0, %v390
    %v392 = vpop.f32.mrb[0].mxu0
    %v393 = vpop.f32.mrb[0].mxu0
    %v394 = vadd.f32 0.0, %v393
    %v395 = vpop.f32.mrb[0].mxu0
    %396 = vdwg.mxu0
    %v397 = vadd.f32 %v238, %v59
    %v398 = vadd.f32 %v241, %v60
    %v399 = vadd.f32 %v289, %v61
    %v400 = vadd.f32 %v292, %v62
    %v401 = vadd.f32 %v340, %v63
    %v402 = vadd.f32 %v343, %v64
    %v403 = vadd.f32 %v391, %v65
    %v404 = vadd.f32 %v394, %v66
    %vm405 = vcmask 130048
    %v406 = vsel %vm405, %v397, -inf
    %407 = vmax.xlane.f32.xlu0 %v406
    %v408 = vpop.xlane.xlu0 %407
    %v409 = vsel %vm405, %v398, -inf
    %410 = vmax.xlane.f32.xlu0 %v409
    %v411 = vpop.xlane.xlu0 %410
    %v412 = vsel %vm405, %v399, -inf
    %413 = vmax.xlane.f32.xlu0 %v412
    %v414 = vpop.xlane.xlu0 %413
    %v415 = vsel %vm405, %v400, -inf
    %416 = vmax.xlane.f32.xlu0 %v415
    %v417 = vpop.xlane.xlu0 %416
    %v418 = vsel %vm405, %v401, -inf
    %419 = vmax.xlane.f32.xlu0 %v418
    %v420 = vpop.xlane.xlu0 %419
    %v421 = vsel %vm405, %v402, -inf
    %422 = vmax.xlane.f32.xlu0 %v421
    %v423 = vpop.xlane.xlu0 %422
    %v424 = vsel %vm405, %v403, -inf
    %425 = vmax.xlane.f32.xlu0 %v424
    %v426 = vpop.xlane.xlu0 %425
    %v427 = vsel %vm405, %v404, -inf
    %428 = vmax.xlane.f32.xlu0 %v427
    %v429 = vpop.xlane.xlu0 %428
    %v430 = vsub.f32 %v397, %v408
    %v431 = vsub.f32 %v398, %v411
    %v432 = vsub.f32 %v399, %v414
    %v433 = vsub.f32 %v400, %v417
    %v434 = vsub.f32 %v401, %v420
    %v435 = vsub.f32 %v402, %v423
    %v436 = vsub.f32 %v403, %v426
    %v437 = vsub.f32 %v404, %v429
    %v438 = vmul.f32 %v430, 1.442695
    %v439 = vpow.pop %v438
    %v440 = vmul.f32 %v431, 1.442695
    %v441 = vpow.pop %v440
    %v442 = vmul.f32 %v432, 1.442695
    %v443 = vpow.pop %v442
    %v444 = vmul.f32 %v433, 1.442695
    %v445 = vpow.pop %v444
    %v446 = vmul.f32 %v434, 1.442695
    %v447 = vpow.pop %v446
    %v448 = vmul.f32 %v435, 1.442695
    %v449 = vpow.pop %v448
    %v450 = vmul.f32 %v436, 1.442695
    %v451 = vpow.pop %v450
    %v452 = vmul.f32 %v437, 1.442695
    %v453 = vpow.pop %v452
    %v454 = vsel %vm405, %v439, 0.0
    %455 = vadd.xlane.f32.xlu0 %v454
    %v456 = vpop.xlane.xlu0 %455
    %v457 = vsel %vm405, %v441, 0.0
    %458 = vadd.xlane.f32.xlu0 %v457
    %v459 = vpop.xlane.xlu0 %458
    %v460 = vsel %vm405, %v443, 0.0
    %461 = vadd.xlane.f32.xlu0 %v460
    %v462 = vpop.xlane.xlu0 %461
    %v463 = vsel %vm405, %v445, 0.0
    %464 = vadd.xlane.f32.xlu0 %v463
    %v465 = vpop.xlane.xlu0 %464
    %v466 = vsel %vm405, %v447, 0.0
    %467 = vadd.xlane.f32.xlu0 %v466
    %v468 = vpop.xlane.xlu0 %467
    %v469 = vsel %vm405, %v449, 0.0
    %470 = vadd.xlane.f32.xlu0 %v469
    %v471 = vpop.xlane.xlu0 %470
    %v472 = vsel %vm405, %v451, 0.0
    %473 = vadd.xlane.f32.xlu0 %v472
    %v474 = vpop.xlane.xlu0 %473
    %v475 = vsel %vm405, %v453, 0.0
    %476 = vadd.xlane.f32.xlu0 %v475
    %v477 = vpop.xlane.xlu0 %476
    %v478 = vrcp.pop %v456
    %v479 = vrcp.pop %v459
    %v480 = vrcp.pop %v462
    %v481 = vrcp.pop %v465
    %v482 = vrcp.pop %v468
    %v483 = vrcp.pop %v471
    %v484 = vrcp.pop %v474
    %v485 = vrcp.pop %v477
    %v486 = vmul.f32 %v439, %v478
    %v487 = vmul.f32 %v441, %v479
    %v488 = vmul.f32 %v443, %v480
    %v489 = vmul.f32 %v445, %v481
    %v490 = vmul.f32 %v447, %v482
    %v491 = vmul.f32 %v449, %v483
    %v492 = vmul.f32 %v451, %v484
    %v493 = vmul.f32 %v453, %v485
    %v494 = vpack.c.bf16 %v487, %v486
    %v495 = vpack.c.bf16 %v489, %v488
    %v496 = vpack.c.bf16 %v491, %v490
    %v497 = vpack.c.bf16 %v493, %v492
    %498 = vrot.lane.b32.xlu0 %v192, 64
    %v499 = vpop.permute.xlu0 %498
    %v502 = vsel %vm405, %v494, 0
    %504 = vmatprep.subr.bf16.mxu0 0
    %505 = vmatpush1.bf16.msra.mxu0 %v499
    %506 = vmatprep.subr.bf16.mxu0 0
    %507 = vmatpush1.bf16.msra.mxu0 0
    %508 = vmatprep.subr.bf16.mxu0 0
    %509 = vmatpush1.bf16.msra.mxu0 0
    %510 = vmatprep.subr.bf16.mxu0 0
    %511 = vmatpush1.bf16.msra.mxu0 0
    %512 = vmatprep.subr.bf16.mxu0 0
    %513 = vmatpush1.bf16.msra.mxu0 0
    %514 = vmatprep.subr.bf16.mxu0 0
    %515 = vmatpush1.bf16.msra.mxu0 0
    %516 = vmatprep.subr.bf16.mxu0 0
    %517 = vmatpush1.bf16.msra.mxu0 0
    %518 = vmatprep.subr.bf16.mxu0 0
    %519 = vmatpush1.bf16.msra.mxu0 0
    %520 = vmatprep.subr.bf16.mxu0 0
    %521 = vmatpush1.bf16.msra.mxu0 0
    %522 = vmatprep.subr.bf16.mxu0 0
    %523 = vmatpush1.bf16.msra.mxu0 0
    %524 = vmatprep.subr.bf16.mxu0 0
    %525 = vmatpush1.bf16.msra.mxu0 0
    %526 = vmatprep.subr.bf16.mxu0 0
    %527 = vmatpush1.bf16.msra.mxu0 0
    %528 = vmatprep.subr.bf16.mxu0 0
    %529 = vmatpush1.bf16.msra.mxu0 0
    %530 = vmatprep.subr.bf16.mxu0 0
    %531 = vmatpush1.bf16.msra.mxu0 0
    %532 = vmatprep.subr.bf16.mxu0 0
    %533 = vmatpush1.bf16.msra.mxu0 0
    %534 = vmatprep.subr.bf16.mxu0 0
    %535 = vmatpush1.bf16.msra.mxu0 0
    %536 = vmatprep.mubr.bf16.mxu0 0
    %537 = vmatmul.mubr.bf16.gmra.mrb[0].mxu0 %v502
    %v538 = vpop.f32.mrb[0].mxu0
    %v539 = vadd.f32 0.0, %v538
    %v540 = vpop.f32.mrb[0].mxu0
    %v541 = vpop.f32.mrb[0].mxu0
    %v542 = vadd.f32 0.0, %v541
    %v543 = vpop.f32.mrb[0].mxu0
    %544 = vdwg.mxu0
    %545 = vrot.lane.b32.xlu0 %v192, 56
    %v546 = vpop.permute.xlu0 %545
    %v549 = vsel %vm405, %v495, 0
    %551 = vmatprep.subr.bf16.mxu0 0
    %552 = vmatpush1.bf16.msra.mxu0 %v546
    %553 = vmatprep.subr.bf16.mxu0 0
    %554 = vmatpush1.bf16.msra.mxu0 0
    %555 = vmatprep.subr.bf16.mxu0 0
    %556 = vmatpush1.bf16.msra.mxu0 0
    %557 = vmatprep.subr.bf16.mxu0 0
    %558 = vmatpush1.bf16.msra.mxu0 0
    %559 = vmatprep.subr.bf16.mxu0 0
    %560 = vmatpush1.bf16.msra.mxu0 0
    %561 = vmatprep.subr.bf16.mxu0 0
    %562 = vmatpush1.bf16.msra.mxu0 0
    %563 = vmatprep.subr.bf16.mxu0 0
    %564 = vmatpush1.bf16.msra.mxu0 0
    %565 = vmatprep.subr.bf16.mxu0 0
    %566 = vmatpush1.bf16.msra.mxu0 0
    %567 = vmatprep.subr.bf16.mxu0 0
    %568 = vmatpush1.bf16.msra.mxu0 0
    %569 = vmatprep.subr.bf16.mxu0 0
    %570 = vmatpush1.bf16.msra.mxu0 0
    %571 = vmatprep.subr.bf16.mxu0 0
    %572 = vmatpush1.bf16.msra.mxu0 0
    %573 = vmatprep.subr.bf16.mxu0 0
    %574 = vmatpush1.bf16.msra.mxu0 0
    %575 = vmatprep.subr.bf16.mxu0 0
    %576 = vmatpush1.bf16.msra.mxu0 0
    %577 = vmatprep.subr.bf16.mxu0 0
    %578 = vmatpush1.bf16.msra.mxu0 0
    %579 = vmatprep.subr.bf16.mxu0 0
    %580 = vmatpush1.bf16.msra.mxu0 0
    %581 = vmatprep.subr.bf16.mxu0 0
    %582 = vmatpush1.bf16.msra.mxu0 0
    %583 = vmatprep.mubr.bf16.mxu0 0
    %584 = vmatmul.mubr.bf16.gmra.mrb[0].mxu0 %v549
    %v585 = vpop.f32.mrb[0].mxu0
    %v586 = vadd.f32 0.0, %v585
    %v587 = vpop.f32.mrb[0].mxu0
    %v588 = vpop.f32.mrb[0].mxu0
    %v589 = vadd.f32 0.0, %v588
    %v590 = vpop.f32.mrb[0].mxu0
    %591 = vdwg.mxu0
    %592 = vrot.lane.b32.xlu0 %v192, 48
    %v593 = vpop.permute.xlu0 %592
    %v596 = vsel %vm405, %v496, 0
    %598 = vmatprep.subr.bf16.mxu0 0
    %599 = vmatpush1.bf16.msra.mxu0 %v593
    %600 = vmatprep.subr.bf16.mxu0 0
    %601 = vmatpush1.bf16.msra.mxu0 0
    %602 = vmatprep.subr.bf16.mxu0 0
    %603 = vmatpush1.bf16.msra.mxu0 0
    %604 = vmatprep.subr.bf16.mxu0 0
    %605 = vmatpush1.bf16.msra.mxu0 0
    %606 = vmatprep.subr.bf16.mxu0 0
    %607 = vmatpush1.bf16.msra.mxu0 0
    %608 = vmatprep.subr.bf16.mxu0 0
    %609 = vmatpush1.bf16.msra.mxu0 0
    %610 = vmatprep.subr.bf16.mxu0 0
    %611 = vmatpush1.bf16.msra.mxu0 0
    %612 = vmatprep.subr.bf16.mxu0 0
    %613 = vmatpush1.bf16.msra.mxu0 0
    %614 = vmatprep.subr.bf16.mxu0 0
    %615 = vmatpush1.bf16.msra.mxu0 0
    %616 = vmatprep.subr.bf16.mxu0 0
    %617 = vmatpush1.bf16.msra.mxu0 0
    %618 = vmatprep.subr.bf16.mxu0 0
    %619 = vmatpush1.bf16.msra.mxu0 0
    %620 = vmatprep.subr.bf16.mxu0 0
    %621 = vmatpush1.bf16.msra.mxu0 0
    %622 = vmatprep.subr.bf16.mxu0 0
    %623 = vmatpush1.bf16.msra.mxu0 0
    %624 = vmatprep.subr.bf16.mxu0 0
    %625 = vmatpush1.bf16.msra.mxu0 0
    %626 = vmatprep.subr.bf16.mxu0 0
    %627 = vmatpush1.bf16.msra.mxu0 0
    %628 = vmatprep.subr.bf16.mxu0 0
    %629 = vmatpush1.bf16.msra.mxu0 0
    %630 = vmatprep.mubr.bf16.mxu0 0
    %631 = vmatmul.mubr.bf16.gmra.mrb[0].mxu0 %v596
    %v632 = vpop.f32.mrb[0].mxu0
    %v633 = vadd.f32 0.0, %v632
    %v634 = vpop.f32.mrb[0].mxu0
    %v635 = vpop.f32.mrb[0].mxu0
    %v636 = vadd.f32 0.0, %v635
    %v637 = vpop.f32.mrb[0].mxu0
    %638 = vdwg.mxu0
    %639 = vrot.lane.b32.xlu0 %v192, 40
    %v640 = vpop.permute.xlu0 %639
    %v643 = vsel %vm405, %v497, 0
    %645 = vmatprep.subr.bf16.mxu0 0
    %646 = vmatpush1.bf16.msra.mxu0 %v640
    %647 = vmatprep.subr.bf16.mxu0 0
    %648 = vmatpush1.bf16.msra.mxu0 0
    %649 = vmatprep.subr.bf16.mxu0 0
    %650 = vmatpush1.bf16.msra.mxu0 0
    %651 = vmatprep.subr.bf16.mxu0 0
    %652 = vmatpush1.bf16.msra.mxu0 0
    %653 = vmatprep.subr.bf16.mxu0 0
    %654 = vmatpush1.bf16.msra.mxu0 0
    %655 = vmatprep.subr.bf16.mxu0 0
    %656 = vmatpush1.bf16.msra.mxu0 0
    %657 = vmatprep.subr.bf16.mxu0 0
    %658 = vmatpush1.bf16.msra.mxu0 0
    %659 = vmatprep.subr.bf16.mxu0 0
    %660 = vmatpush1.bf16.msra.mxu0 0
    %661 = vmatprep.subr.bf16.mxu0 0
    %662 = vmatpush1.bf16.msra.mxu0 0
    %663 = vmatprep.subr.bf16.mxu0 0
    %664 = vmatpush1.bf16.msra.mxu0 0
    %665 = vmatprep.subr.bf16.mxu0 0
    %666 = vmatpush1.bf16.msra.mxu0 0
    %667 = vmatprep.subr.bf16.mxu0 0
    %668 = vmatpush1.bf16.msra.mxu0 0
    %669 = vmatprep.subr.bf16.mxu0 0
    %670 = vmatpush1.bf16.msra.mxu0 0
    %671 = vmatprep.subr.bf16.mxu0 0
    %672 = vmatpush1.bf16.msra.mxu0 0
    %673 = vmatprep.subr.bf16.mxu0 0
    %674 = vmatpush1.bf16.msra.mxu0 0
    %675 = vmatprep.subr.bf16.mxu0 0
    %676 = vmatpush1.bf16.msra.mxu0 0
    %677 = vmatprep.mubr.bf16.mxu0 0
    %678 = vmatmul.mubr.bf16.gmra.mrb[0].mxu0 %v643
    %v679 = vpop.f32.mrb[0].mxu0
    %v680 = vadd.f32 0.0, %v679
    %v681 = vpop.f32.mrb[0].mxu0
    %v682 = vpop.f32.mrb[0].mxu0
    %v683 = vadd.f32 0.0, %v682
    %v684 = vpop.f32.mrb[0].mxu0
    %685 = vdwg.mxu0
    %688 = vrot.lane.b32.xlu0 %v586, 8
    %v689 = vpop.permute.xlu0 %688
    %690 = vrot.lane.b32.xlu0 %v589, 8
    %v691 = vpop.permute.xlu0 %690
    %696 = vrot.lane.b32.xlu0 %v633, 16
    %v697 = vpop.permute.xlu0 %696
    %698 = vrot.lane.b32.xlu0 %v636, 16
    %v699 = vpop.permute.xlu0 %698
    %704 = vrot.lane.b32.xlu0 %v680, 24
    %v705 = vpop.permute.xlu0 %704
    %706 = vrot.lane.b32.xlu0 %v683, 24
    %v707 = vpop.permute.xlu0 %706
    %v710 = vsel %vm196, %v539, %v689
    %v711 = vsel %vm196, %v542, %v691
    %v712 = vsel %vm405, %v710, %v697
    %v713 = vsel %vm405, %v711, %v699
    %vm714 = vcmask 195584
    %v715 = vsel %vm714, %v712, %v705
    %v716 = vsel %vm714, %v713, %v707
    %v717 = vpack.c.bf16 %v716, %v715
    %v718 = vlaneseq
    %v719 = vshrl.u32 %v718, 7
    %v720 = vsub.s32 5, %v719
    %v721 = vrot.slane %v67, %v720
    %722 = vrot.lane.b32.xlu0 %v144, 32
    %v723 = vpop.permute.xlu0 %722
    %724 = vrot.lane.b32.xlu0 %v145, 32
    %v725 = vpop.permute.xlu0 %724
    %v729 = vsel %vm76, %v717, 0
    %731 = vmatprep.subr.bf16.mxu0 0
    %732 = vmatpush1.bf16.msra.mxu0 %v723
    %733 = vmatprep.subr.bf16.mxu0 0
    %734 = vmatpush1.bf16.msra.mxu0 %v725
    %735 = vmatprep.subr.bf16.mxu0 0
    %736 = vmatpush1.bf16.msra.mxu0 0
    %737 = vmatprep.subr.bf16.mxu0 0
    %738 = vmatpush1.bf16.msra.mxu0 0
    %739 = vmatprep.subr.bf16.mxu0 0
    %740 = vmatpush1.bf16.msra.mxu0 0
    %741 = vmatprep.subr.bf16.mxu0 0
    %742 = vmatpush1.bf16.msra.mxu0 0
    %743 = vmatprep.subr.bf16.mxu0 0
    %744 = vmatpush1.bf16.msra.mxu0 0
    %745 = vmatprep.subr.bf16.mxu0 0
    %746 = vmatpush1.bf16.msra.mxu0 0
    %747 = vmatprep.subr.bf16.mxu0 0
    %748 = vmatpush1.bf16.msra.mxu0 0
    %749 = vmatprep.subr.bf16.mxu0 0
    %750 = vmatpush1.bf16.msra.mxu0 0
    %751 = vmatprep.subr.bf16.mxu0 0
    %752 = vmatpush1.bf16.msra.mxu0 0
    %753 = vmatprep.subr.bf16.mxu0 0
    %754 = vmatpush1.bf16.msra.mxu0 0
    %755 = vmatprep.subr.bf16.mxu0 0
    %756 = vmatpush1.bf16.msra.mxu0 0
    %757 = vmatprep.subr.bf16.mxu0 0
    %758 = vmatpush1.bf16.msra.mxu0 0
    %759 = vmatprep.subr.bf16.mxu0 0
    %760 = vmatpush1.bf16.msra.mxu0 0
    %761 = vmatprep.subr.bf16.mxu0 0
    %762 = vmatpush1.bf16.msra.mxu0 0
    %763 = vmatprep.mubr.bf16.mxu0 0
    %764 = vmatmul.mubr.bf16.gmra.mrb[0].mxu0 %v729
    %v765 = vpop.f32.mrb[0].mxu0
    %v766 = vadd.f32 %v721, %v765
    %v767 = vpop.f32.mrb[0].mxu0
    %v768 = vpop.f32.mrb[0].mxu0
    %v769 = vadd.f32 %v721, %v768
    %v770 = vpop.f32.mrb[0].mxu0
    %771 = vdwg.mxu0
    %v772 = vadd.f32 %v57, %v766
    %v773 = vadd.f32 %v58, %v769
    %v774 = vsel %vm76, %v772, 0.0
    %775 = vadd.xlane.f32.xlu0 %v774
    %v776 = vpop.xlane.xlu0 %775
    %v777 = vsel %vm76, %v773, 0.0
    %778 = vadd.xlane.f32.xlu0 %v777
    %v779 = vpop.xlane.xlu0 %778
    %v780 = vmul.f32 %v776, %v83
    %v781 = vmul.f32 %v779, %v83
    %v782 = vsub.f32 %v772, %v780
    %v783 = vsub.f32 %v773, %v781
    %v784 = vmul.f32 %v782, %v782
    %v785 = vmul.f32 %v783, %v783
    %v786 = vsel %vm76, %v784, 0.0
    %787 = vadd.xlane.f32.xlu0 %v786
    %v788 = vpop.xlane.xlu0 %787
    %v789 = vsel %vm76, %v785, 0.0
    %790 = vadd.xlane.f32.xlu0 %v789
    %v791 = vpop.xlane.xlu0 %790
    %v792 = vmul.f32 %v788, %v96
    %v793 = vmul.f32 %v791, %v96
    %v794 = vlaneseq
    %v795 = vshrl.u32 %v794, 7
    %v796 = vsub.s32 2, %v795
    %v797 = vrot.slane %v67, %v796
    %v798 = vmul.f32 %v797, %v782
    %v799 = vmul.f32 %v797, %v783
    %v800 = vrsqrt.pop %v792
    %v801 = vmul.f32 %v792, %v800
    %vm802 = vcmp.eq.f32.partialorder %v792, inf
    %v803 = vsel %vm802, %v792, %v801
    %vm804 = vcmp.eq.f32.partialorder %v792, 0.0
    %v805 = vand.u32 %v792, 2147483648
    %v806 = vsel %vm804, %v805, %v803
    %v807 = vrsqrt.pop %v793
    %v808 = vmul.f32 %v793, %v807
    %vm809 = vcmp.eq.f32.partialorder %v793, inf
    %v810 = vsel %vm809, %v793, %v808
    %vm811 = vcmp.eq.f32.partialorder %v793, 0.0
    %v812 = vand.u32 %v793, 2147483648
    %v813 = vsel %vm811, %v812, %v810
    %v814 = vadd.f32 %v806, 1e-06
    %v815 = vadd.f32 %v813, 1e-06
    %v816 = vrcp.pop %v814
    %v817 = vmul.f32 %v798, %v816
    %v818 = vrcp.pop %v815
    %v819 = vmul.f32 %v799, %v818
    %v820 = vlaneseq
    %v821 = vshrl.u32 %v820, 7
    %v822 = vsub.s32 3, %v821
    %v823 = vrot.slane %v67, %v822
    %v824 = vadd.f32 %v817, %v823
    %v825 = vadd.f32 %v819, %v823
    %v826 = vpack.c.bf16 %v825, %v824
    %v827 = vlaneseq
    %v828 = vshrl.u32 %v827, 7
    %v829 = vsub.s32 6, %v828
    %v830 = vrot.slane %v67, %v829
    %v831 = vunpack.c.h.b16 %v68
    %v832 = vunpack.c.h.b16 %v70
    %v833 = vunpack.c.h.b16 %v72
    %v834 = vunpack.c.h.b16 %v74
    %v835 = vpack.c.b16 %v832, %v831
    %v836 = vpack.c.b16 %v834, %v833
    %v840 = vsel %vm76, %v826, 0
    %842 = vmatprep.subr.bf16.mxu0 0
    %843 = vmatpush1.bf16.msra.mxu0 %v835
    %844 = vmatprep.subr.bf16.mxu0 0
    %845 = vmatpush1.bf16.msra.mxu0 %v836
    %846 = vmatprep.subr.bf16.mxu0 0
    %847 = vmatpush1.bf16.msra.mxu0 0
    %848 = vmatprep.subr.bf16.mxu0 0
    %849 = vmatpush1.bf16.msra.mxu0 0
    %850 = vmatprep.subr.bf16.mxu0 0
    %851 = vmatpush1.bf16.msra.mxu0 0
    %852 = vmatprep.subr.bf16.mxu0 0
    %853 = vmatpush1.bf16.msra.mxu0 0
    %854 = vmatprep.subr.bf16.mxu0 0
    %855 = vmatpush1.bf16.msra.mxu0 0
    %856 = vmatprep.subr.bf16.mxu0 0
    %857 = vmatpush1.bf16.msra.mxu0 0
    %858 = vmatprep.subr.bf16.mxu0 0
    %859 = vmatpush1.bf16.msra.mxu0 0
    %860 = vmatprep.subr.bf16.mxu0 0
    %861 = vmatpush1.bf16.msra.mxu0 0
    %862 = vmatprep.subr.bf16.mxu0 0
    %863 = vmatpush1.bf16.msra.mxu0 0
    %864 = vmatprep.subr.bf16.mxu0 0
    %865 = vmatpush1.bf16.msra.mxu0 0
    %866 = vmatprep.subr.bf16.mxu0 0
    %867 = vmatpush1.bf16.msra.mxu0 0
    %868 = vmatprep.subr.bf16.mxu0 0
    %869 = vmatpush1.bf16.msra.mxu0 0
    %870 = vmatprep.subr.bf16.mxu0 0
    %871 = vmatpush1.bf16.msra.mxu0 0
    %872 = vmatprep.subr.bf16.mxu0 0
    %873 = vmatpush1.bf16.msra.mxu0 0
    %874 = vmatprep.mubr.bf16.mxu0 0
    %875 = vmatmul.mubr.bf16.gmra.mrb[0].mxu0 %v840
    %v876 = vpop.f32.mrb[0].mxu0
    %v877 = vadd.f32 %v830, %v876
    %v878 = vpop.f32.mrb[0].mxu0
    %v879 = vpop.f32.mrb[0].mxu0
    %v880 = vadd.f32 %v830, %v879
    %v881 = vpop.f32.mrb[0].mxu0
    %882 = vdwg.mxu0
    %v883 = vmax.f32 %v877, 0.0
    %v884 = vmax.f32 %v880, 0.0
    %v885 = vpack.c.bf16 %v884, %v883
    %v886 = vlaneseq
    %v887 = vshrl.u32 %v886, 7
    %v888 = vsub.s32 7, %v887
    %v889 = vrot.slane %v67, %v888
    %v894 = vunpack.c.l.b16 %v69
    %v895 = vunpack.c.l.b16 %v71
    %v896 = vunpack.c.l.b16 %v73
    %v897 = vunpack.c.l.b16 %v75
    %v898 = vpack.c.b16 %v895, %v894
    %v899 = vpack.c.b16 %v897, %v896
    %vm900 = vcmask 523264
    %v902 = vsel %vm900, %v885, 0
    %v905 = vsel %vm900, %v898, 0
    %v908 = vsel %vm900, %v899, 0
    %910 = vmatprep.subr.bf16.mxu0 0
    %911 = vmatpush1.bf16.xpose.msra.mxu0 %v905
    %912 = vmatprep.subr.bf16.mxu0 0
    %913 = vmatpush1.bf16.xpose.msra.mxu0 %v908
    %914 = vmatprep.subr.bf16.mxu0 0
    %915 = vmatpush1.bf16.xpose.msra.mxu0 0
    %916 = vmatprep.subr.bf16.mxu0 0
    %917 = vmatpush1.bf16.xpose.msra.mxu0 0
    %918 = vmatprep.subr.bf16.mxu0 0
    %919 = vmatpush1.bf16.xpose.msra.mxu0 0
    %920 = vmatprep.subr.bf16.mxu0 0
    %921 = vmatpush1.bf16.xpose.msra.mxu0 0
    %922 = vmatprep.subr.bf16.mxu0 0
    %923 = vmatpush1.bf16.xpose.msra.mxu0 0
    %924 = vmatprep.subr.bf16.mxu0 0
    %925 = vmatpush1.bf16.xpose.msra.mxu0 0
    %926 = vmatprep.subr.bf16.mxu0 0
    %927 = vmatpush1.bf16.xpose.msra.mxu0 0
    %928 = vmatprep.subr.bf16.mxu0 0
    %929 = vmatpush1.bf16.xpose.msra.mxu0 0
    %930 = vmatprep.subr.bf16.mxu0 0
    %931 = vmatpush1.bf16.xpose.msra.mxu0 0
    %932 = vmatprep.subr.bf16.mxu0 0
    %933 = vmatpush1.bf16.xpose.msra.mxu0 0
    %934 = vmatprep.subr.bf16.mxu0 0
    %935 = vmatpush1.bf16.xpose.msra.mxu0 0
    %936 = vmatprep.subr.bf16.mxu0 0
    %937 = vmatpush1.bf16.xpose.msra.mxu0 0
    %938 = vmatprep.subr.bf16.mxu0 0
    %939 = vmatpush1.bf16.xpose.msra.mxu0 0
    %940 = vmatprep.subr.bf16.mxu0 0
    %941 = vmatpush1.bf16.xpose.msra.mxu0 0
    %942 = vmatprep.mubr.bf16.mxu0 0
    %943 = vmatmul.mubr.bf16.gmra.mrb[0].mxu0 %v902
    %v944 = vpop.f32.mrb[0].mxu0
    %v945 = vadd.f32 %v889, %v944
    %v946 = vpop.f32.mrb[0].mxu0
    %v947 = vpop.f32.mrb[0].mxu0
    %v948 = vadd.f32 %v889, %v947
    %v949 = vpop.f32.mrb[0].mxu0
    %950 = vdwg.mxu0
    %v951 = vadd.f32 %v772, %v945
    %v952 = vadd.f32 %v773, %v948
    %953 = vst.msk [vmem:[#allocation8] sm:$0xff] %vm76, %v951
    %954 = vst.msk [vmem:[#allocation8 + $0x8] sm:$0xff] %vm76, %v952
    // Predicated region
    $region26: #{encoder_layer.1} parent=1 // pred_check
      _
    $region27: #{encoder_layer.1} parent=1 // pred_check_branch
      %956 = sbr.rel (0) target = $region29
    $region28: #{encoder_layer.1} parent=1 // pred_region
      %s958 = ssub.s32 256, 256
      %959 = vsyncadd [#allocation4], %s958
      %s960 = sshll.u32 [#allocation8], 4
      %s961 = int_to_ptr.vmem [resolvable:$true] %s960
      %966 = dma.vmem_to_hbm [thread:$0]  %s961, 256, %s3, [#allocation4], 128, 128, 8
    $region29: #{encoder_layer.1} parent=1 // pred_fallthru
      _
    // Predicated region
    $region30: #{encoder_layer.1} parent=1 // pred_check
      _
    $region31: #{encoder_layer.1} parent=1 // pred_check_branch
      %968 = sbr.rel (0) target = $region33
    $region32: #{encoder_layer.1} parent=1 // pred_region
      %969 = dma.done [#allocation4], 256
    $region33: #{encoder_layer.1} parent=1 // pred_fallthru
      _
    %970 = vsyncpa [#allocation3], 1
    %971 = vsyncpa [#allocation6], 1
    %972 = vsyncpa [#allocation4], 1

</llo_original>
